<compile_context>
chip_gen: v7x
topology: tpu7x:2x2x1
jax: 0.10.0
libtpu: 0.0.40
codegen_flags: <defaults>
</compile_context>

<pallas_src>
import functools

import jax
import jax.numpy as jnp
from jax import lax
from jax.experimental import pallas as pl
from jax.experimental.pallas import tpu as pltpu


# Lazily probed: does this jax/Mosaic accept pl.Buffered(1) on a BlockSpec?
_WEIGHT_SINGLE_BUFFER = [None]


def _round_up(v, m):
    return ((v + m - 1) // m) * m


def _cdiv(a, b):
    return -(-a // b)


def _vmem_capacity_bytes():
    """Physical VMEM of the local TPU generation; conservative 64 MiB fallback."""
    default = 64 * 1024 * 1024
    try:
        info_fn = getattr(pltpu, "get_tpu_info", None)
        if info_fn is None:
            return default
        cap = getattr(info_fn(), "vmem_capacity_bytes", None)
        return int(cap) if cap else default
    except Exception:
        return default


def _compiler_params(vmem_limit_bytes):
    cls = (getattr(pltpu, "CompilerParams", None)
           or getattr(pltpu, "TPUCompilerParams", None))
    if cls is None:  # very old jax: run with compiler defaults
        return None
    return cls(dimension_semantics=("parallel",),
               vmem_limit_bytes=int(vmem_limit_bytes))


def _cln_kernel(x_ref, cond_ref, wdbd_ref, wb_ref, o_ref, *,
                eps, hidden, fused, lowp_apply):
    # x_ref:    (T, H)   row tile of inputs (caller dtype)
    # cond_ref: (T, C)   row tile of conditioning vectors (caller dtype)
    # wdbd_ref: (C, 2H)  fused [Wd^T | Bd^T]     when H % 128 == 0
    #           (2, C, H) stacked [Wd^T, Bd^T]   otherwise
    # wb_ref:   (2, H)   [weight; bias]
    c = cond_ref[...]

    if fused:
        # One MXU matmul computes both projections; the column-H split is a
        # free lane-aligned view because H is a multiple of 128.
        params = jnp.dot(c, wdbd_ref[...], preferred_element_type=jnp.float32)
        w_cond = params[:, :hidden]
        b_cond = params[:, hidden:]
    else:
        # Two matmuls on stacked weights avoid a mid-lane-tile slice.
        w_cond = jnp.dot(c, wdbd_ref[0], preferred_element_type=jnp.float32)
        b_cond = jnp.dot(c, wdbd_ref[1], preferred_element_type=jnp.float32)

    wb = wb_ref[...].astype(jnp.float32)          # (2, H)
    weight = w_cond + wb[0:1, :]
    bias = b_cond + wb[1:2, :]

    # Two-pass row statistics in f32 (matches the PyTorch reference; no
    # E[x^2] - mean^2 cancellation).
    x = x_ref[...].astype(jnp.float32)
    inv_h = jnp.float32(1.0 / hidden)
    mean = jnp.sum(x, axis=-1, keepdims=True) * inv_h
    xc = x - mean
    var = jnp.sum(xc * xc, axis=-1, keepdims=True) * inv_h
    xhat = xc * lax.rsqrt(var + jnp.float32(eps))

    if lowp_apply:
        # bf16/f16 I/O: scale/shift at the packed VALU rate (v6e/v7x).
        dt = o_ref.dtype
        o_ref[...] = xhat.astype(dt) * weight.astype(dt) + bias.astype(dt)
    else:
        o_ref[...] = (xhat * weight + bias).astype(o_ref.dtype)


def prepare_cln_params(weight, bias, weight_dense_w, bias_dense_w):
    """Hoist per-forward weight prep out of the hot path (call once at setup).

    weight, bias: [H]; weight_dense_w, bias_dense_w: [H, C] (nn.Linear layout).
    Parameters keep their own dtype (bf16 stays bf16 for the native MXU path;
    accumulation is f32 inside the kernel)."""
    hidden = weight.shape[0]
    fused = (hidden % 128 == 0)
    if fused:
        wdbd = jnp.concatenate([weight_dense_w.T, bias_dense_w.T], axis=1)  # (C, 2H)
    else:
        wdbd = jnp.stack([weight_dense_w.T, bias_dense_w.T], axis=0)        # (2, C, H)
    wb = jnp.stack([weight, bias], axis=0)                                  # (2, H)
    return wdbd, wb, fused


def _pick_row_tile(n_rows, hidden, cond_dim, itemsize, weight_bytes,
                   vmem_budget_bytes, max_tile=1024):
    """Largest sublane-aligned row tile whose double-buffered I/O tiles plus the
    in-kernel f32 working set fit the per-generation VMEM budget, capped so the
    1-D grid keeps >= ~4 steps (pipeline overlap + megacore sharding)."""
    itemsize = int(itemsize)
    sublane_pack = max(8, 32 // itemsize)             # 8 f32 / 16 bf16 / 32 int8
    io_per_row = 2 * (2 * hidden + cond_dim) * itemsize     # x/cond/out, 2-deep
    work_per_row = 4 * hidden * 4                           # xc/xhat + w/b (f32)
    per_row = io_per_row + work_per_row
    avail = max(vmem_budget_bytes - weight_bytes, per_row * sublane_pack)
    tile = min(max_tile, avail // per_row)
    tile = max(sublane_pack, (tile // sublane_pack) * sublane_pack)
    steps_cap = max(sublane_pack, _round_up(_cdiv(n_rows, 4), sublane_pack))
    return int(min(tile, steps_cap))


def conditional_layer_norm(x, cond, params, *, eps=1e-12, row_tile=None):
    """x: [B, S, H], cond: [B, S, C]; params = prepare_cln_params(...)."""
    wdbd, wb, fused = params
    B, S, H = x.shape
    C = cond.shape[-1]
    N = B * S

    x2 = x.reshape(N, H)             # caller dtype end-to-end (bf16 stays bf16)
    c2 = cond.reshape(N, C)

    vmem_cap = _vmem_capacity_bytes()
    vmem_limit = int(vmem_cap * 0.85)        # headroom for scratch/bookkeeping
    if row_tile is None:
        # Conservative: assume weight blocks may still be double-buffered.
        weight_bytes = 2 * (wdbd.size * wdbd.dtype.itemsize
                            + wb.size * wb.dtype.itemsize)
        row_tile = _pick_row_tile(N, H, C, x.dtype.itemsize, weight_bytes,
                                  vmem_budget_bytes=int(vmem_cap * 0.70))

    grid = (_cdiv(N, row_tile),)     # masked last block -> no host-side jnp.pad
    lowp_apply = bool(jnp.issubdtype(x.dtype, jnp.floating)
                      and x.dtype.itemsize <= 2)
    kernel = functools.partial(_cln_kernel, eps=float(eps), hidden=H,
                               fused=fused, lowp_apply=lowp_apply)

    def const_spec(shape, single_buffer):
        ndim = len(shape)
        index_map = lambda i: (0,) * ndim
        if single_buffer:
            # Replicated operands: fetched once, single VMEM buffer.
            return pl.BlockSpec(shape, index_map, pipeline_mode=pl.Buffered(1))
        return pl.BlockSpec(shape, index_map)

    def run(single_buffer):
        return pl.pallas_call(
            kernel,
            out_shape=jax.ShapeDtypeStruct((N, H), x.dtype),
            grid=grid,
            in_specs=[
                pl.BlockSpec((row_tile, H), lambda i: (i, 0)),   # x rows
                pl.BlockSpec((row_tile, C), lambda i: (i, 0)),   # cond rows
                const_spec(tuple(wdbd.shape), single_buffer),    # Wd^T / Bd^T
                const_spec(tuple(wb.shape), single_buffer),      # [w; b]
            ],
            out_specs=pl.BlockSpec((row_tile, H), lambda i: (i, 0)),
            compiler_params=_compiler_params(vmem_limit),
        )(x2, c2, wdbd, wb)

    sb = _WEIGHT_SINGLE_BUFFER[0]
    if sb is None:
        try:
            out2 = run(True)
            _WEIGHT_SINGLE_BUFFER[0] = True
        except Exception:
            # This jax/Mosaic rejects pl.Buffered(1); constant-index blocks are
            # still only fetched once, just double-buffered (VMEM waste only).
            _WEIGHT_SINGLE_BUFFER[0] = False
            out2 = run(False)
    else:
        out2 = run(sb)

    return out2.reshape(B, S, H)


def _reference(x, cond, weight, bias, wd, bd, eps):
    # Pure-JAX reference mirroring the PyTorch forward.
    w = cond @ wd.T + weight
    b = cond @ bd.T + bias
    mean = jnp.mean(x, axis=-1, keepdims=True)
    xc = x - mean
    var = jnp.mean(xc ** 2, axis=-1, keepdims=True)
    return xc / jnp.sqrt(var + eps) * w + b


if __name__ == "__main__":
    eps = 1e-12
    key = jax.random.PRNGKey(0)

    ok = True
    # (H=32, C=16): split-weight path (H % 128 != 0); S=7 exercises the masked
    # ragged tail (no host pad).  (H=128, C=16): fused (C, 2H) path.
    for (H, C), shapes in [((32, 16), [(2, 8), (2, 7)]), ((128, 16), [(2, 8)])]:
        kp = jax.random.fold_in(key, H)
        kwd, kbd, kdata = jax.random.split(kp, 3)

        # Module params: weight=1, bias=0 per reset_weight_and_bias(); small
        # random dense weights exercise the conditional path.
        weight = jnp.ones((H,), dtype=jnp.float32)
        bias = jnp.zeros((H,), dtype=jnp.float32)
        weight_dense_w = 0.05 * jax.random.normal(kwd, (H, C), dtype=jnp.float32)
        bias_dense_w = 0.05 * jax.random.normal(kbd, (H, C), dtype=jnp.float32)

        # Weight prep hoisted: done once per parameter set, reused per forward.
        params = prepare_cln_params(weight, bias, weight_dense_w, bias_dense_w)

        for (B, S) in shapes:
            kx_i, kc_i = jax.random.split(jax.random.fold_in(kdata, S), 2)
            x = jax.random.normal(kx_i, (B, S, H), dtype=jnp.float32)
            cond = jax.random.normal(kc_i, (B, S, C), dtype=jnp.float32)

            out = conditional_layer_norm(x, cond, params, eps=eps)
            out = jax.block_until_ready(out)

            ref = _reference(x, cond, weight, bias,
                             weight_dense_w, bias_dense_w, eps)
            ok &= out.shape == (B, S, H)
            ok &= bool(jnp.allclose(out, ref, atol=1e-5, rtol=1e-5))

    assert ok, "mismatch vs reference"
    print("KERNEL_OK")
</pallas_src>

<mosaic_0001>
module attributes {stable_mosaic.version = 11 : i64} {
  func.func @_cln_kernel(%arg0: i32, %arg1: memref<8x32xf32, #tpu.memory_space<vmem>>, %arg2: memref<8x16xf32, #tpu.memory_space<vmem>>, %arg3: memref<2x16x32xf32, #tpu.memory_space<vmem>>, %arg4: memref<2x32xf32, #tpu.memory_space<vmem>>, %arg5: memref<8x32xf32, #tpu.memory_space<vmem>>) attributes {dimension_semantics = [#tpu.dimension_semantics<parallel>], iteration_bounds = array<i64: 2>, scalar_prefetch = 0 : i64, scratch_operands = 0 : i64, tpu.core_type = #tpu.core_type<tc>, window_params = [{transform_indices = @transform_0, window_bounds = array<i64: 8, 32>}, {transform_indices = @transform_1, window_bounds = array<i64: 8, 16>}, {pipeline_mode = #tpu.pipeline_mode<synchronous>, transform_indices = @transform_2, window_bounds = array<i64: 2, 16, 32>}, {pipeline_mode = #tpu.pipeline_mode<synchronous>, transform_indices = @transform_3, window_bounds = array<i64: 2, 32>}, {transform_indices = @transform_4, window_bounds = array<i64: 8, 32>}]} {
    %c0 = arith.constant 0 : index
    %c0_0 = arith.constant 0 : index
    %0 = vector.load %arg2[%c0, %c0_0] : memref<8x16xf32, #tpu.memory_space<vmem>>, vector<8x16xf32>
    %c0_1 = arith.constant 0 : index
    %c0_2 = arith.constant 0 : index
    %c0_3 = arith.constant 0 : index
    %1 = vector.load %arg3[%c0_1, %c0_2, %c0_3] : memref<2x16x32xf32, #tpu.memory_space<vmem>>, vector<1x16x32xf32>
    %2 = vector.shape_cast %1 : vector<1x16x32xf32> to vector<16x32xf32>
    %cst = arith.constant dense<0.000000e+00> : vector<8x32xf32>
    %3 = tpu.matmul %0, %2, %cst {dimension_numbers = #tpu.dot_dimension_numbers<[1], [0], [0], [1], [0, 0, 1, 1], [], []>} : vector<8x16xf32>, vector<16x32xf32>, vector<8x32xf32> -> vector<8x32xf32>
    %c1 = arith.constant 1 : index
    %c0_4 = arith.constant 0 : index
    %c0_5 = arith.constant 0 : index
    %4 = vector.load %arg3[%c1, %c0_4, %c0_5] : memref<2x16x32xf32, #tpu.memory_space<vmem>>, vector<1x16x32xf32>
    %5 = vector.shape_cast %4 : vector<1x16x32xf32> to vector<16x32xf32>
    %cst_6 = arith.constant dense<0.000000e+00> : vector<8x32xf32>
    %6 = tpu.matmul %0, %5, %cst_6 {dimension_numbers = #tpu.dot_dimension_numbers<[1], [0], [0], [1], [0, 0, 1, 1], [], []>} : vector<8x16xf32>, vector<16x32xf32>, vector<8x32xf32> -> vector<8x32xf32>
    %c0_7 = arith.constant 0 : index
    %c0_8 = arith.constant 0 : index
    %7 = vector.load %arg4[%c0_7, %c0_8] : memref<2x32xf32, #tpu.memory_space<vmem>>, vector<2x32xf32>
    %8 = vector.extract_strided_slice %7 {offsets = [0, 0], sizes = [1, 32], strides = [1, 1]} : vector<2x32xf32> to vector<1x32xf32>
    %9 = vector.broadcast %8 : vector<1x32xf32> to vector<8x32xf32>
    %10 = arith.addf %3, %9 : vector<8x32xf32>
    %11 = vector.extract_strided_slice %7 {offsets = [1, 0], sizes = [1, 32], strides = [1, 1]} : vector<2x32xf32> to vector<1x32xf32>
    %12 = vector.broadcast %11 : vector<1x32xf32> to vector<8x32xf32>
    %13 = arith.addf %6, %12 : vector<8x32xf32>
    %c0_9 = arith.constant 0 : index
    %c0_10 = arith.constant 0 : index
    %14 = vector.load %arg1[%c0_9, %c0_10] : memref<8x32xf32, #tpu.memory_space<vmem>>, vector<8x32xf32>
    %cst_11 = arith.constant dense<0.000000e+00> : vector<8xf32>
    %15 = vector.multi_reduction <add>, %14, %cst_11 [1] : vector<8x32xf32> to vector<8xf32>
    %16 = vector.shape_cast %15 : vector<8xf32> to vector<8x1xf32>
    %cst_12 = arith.constant 3.125000e-02 : f32
    %17 = vector.broadcast %cst_12 : f32 to vector<8x1xf32>
    %18 = arith.mulf %16, %17 : vector<8x1xf32>
    %19 = vector.broadcast %18 : vector<8x1xf32> to vector<8x32xf32>
    %20 = arith.subf %14, %19 : vector<8x32xf32>
    %21 = arith.mulf %20, %20 : vector<8x32xf32>
    %cst_13 = arith.constant dense<0.000000e+00> : vector<8xf32>
    %22 = vector.multi_reduction <add>, %21, %cst_13 [1] : vector<8x32xf32> to vector<8xf32>
    %23 = vector.shape_cast %22 : vector<8xf32> to vector<8x1xf32>
    %cst_14 = arith.constant 3.125000e-02 : f32
    %24 = vector.broadcast %cst_14 : f32 to vector<8x1xf32>
    %25 = arith.mulf %23, %24 : vector<8x1xf32>
    %cst_15 = arith.constant 9.99999996E-13 : f32
    %26 = vector.broadcast %cst_15 : f32 to vector<8x1xf32>
    %27 = arith.addf %25, %26 : vector<8x1xf32>
    %28 = math.rsqrt %27 : vector<8x1xf32>
    %29 = vector.broadcast %28 : vector<8x1xf32> to vector<8x32xf32>
    %30 = arith.mulf %20, %29 : vector<8x32xf32>
    %31 = arith.mulf %30, %10 : vector<8x32xf32>
    %32 = arith.addf %31, %13 : vector<8x32xf32>
    %c0_16 = arith.constant 0 : index
    %c0_17 = arith.constant 0 : index
    %33 = vector.load %arg5[%c0_16, %c0_17] : memref<8x32xf32, #tpu.memory_space<vmem>>, vector<8x32xf32>
    tpu.vector_store %arg5[%c0_16, %c0_17], %32 {strides = array<i32>} : memref<8x32xf32, #tpu.memory_space<vmem>>, vector<8x32xf32>,
    return
  }
  func.func @transform_0(%arg0: i32) -> (i32, i32) {
    %c0_i32 = arith.constant 0 : i32
    %c0_i32_0 = arith.constant 0 : i32
    return %arg0, %c0_i32 : i32, i32
  }
  func.func @transform_1(%arg0: i32) -> (i32, i32) {
    %c0_i32 = arith.constant 0 : i32
    %c0_i32_0 = arith.constant 0 : i32
    return %arg0, %c0_i32 : i32, i32
  }
  func.func @transform_2(%arg0: i32) -> (i32, i32, i32) {
    %c0_i32 = arith.constant 0 : i32
    %c0_i32_0 = arith.constant 0 : i32
    %c0_i32_1 = arith.constant 0 : i32
    %c0_i32_2 = arith.constant 0 : i32
    return %c0_i32, %c0_i32_0, %c0_i32_1 : i32, i32, i32
  }
  func.func @transform_3(%arg0: i32) -> (i32, i32) {
    %c0_i32 = arith.constant 0 : i32
    %c0_i32_0 = arith.constant 0 : i32
    %c0_i32_1 = arith.constant 0 : i32
    return %c0_i32, %c0_i32_0 : i32, i32
  }
  func.func @transform_4(%arg0: i32) -> (i32, i32) {
    %c0_i32 = arith.constant 0 : i32
    %c0_i32_0 = arith.constant 0 : i32
    return %arg0, %c0_i32 : i32, i32
  }
}

module attributes {stable_mosaic.version = 11 : i64} {
  func.func @_cln_kernel(%arg0: i32, %arg1: memref<8x32xf32, #tpu.memory_space<vmem>>, %arg2: memref<8x16xf32, #tpu.memory_space<vmem>>, %arg3: memref<2x16x32xf32, #tpu.memory_space<vmem>>, %arg4: memref<2x32xf32, #tpu.memory_space<vmem>>, %arg5: memref<8x32xf32, #tpu.memory_space<vmem>>) attributes {dimension_semantics = [#tpu.dimension_semantics<parallel>], iteration_bounds = array<i64: 2>, scalar_prefetch = 0 : i64, scratch_operands = 0 : i64, tpu.core_type = #tpu.core_type<tc>, window_params = [{transform_indices = @transform_0, window_bounds = array<i64: 8, 32>}, {transform_indices = @transform_1, window_bounds = array<i64: 8, 16>}, {pipeline_mode = #tpu.pipeline_mode<synchronous>, transform_indices = @transform_2, window_bounds = array<i64: 2, 16, 32>}, {pipeline_mode = #tpu.pipeline_mode<synchronous>, transform_indices = @transform_3, window_bounds = array<i64: 2, 32>}, {transform_indices = @transform_4, window_bounds = array<i64: 8, 32>}]} {
    %c0 = arith.constant 0 : index
    %c0_0 = arith.constant 0 : index
    %0 = vector.load %arg2[%c0, %c0_0] : memref<8x16xf32, #tpu.memory_space<vmem>>, vector<8x16xf32>
    %c0_1 = arith.constant 0 : index
    %c0_2 = arith.constant 0 : index
    %c0_3 = arith.constant 0 : index
    %1 = vector.load %arg3[%c0_1, %c0_2, %c0_3] : memref<2x16x32xf32, #tpu.memory_space<vmem>>, vector<1x16x32xf32>
    %2 = vector.shape_cast %1 : vector<1x16x32xf32> to vector<16x32xf32>
    %cst = arith.constant dense<0.000000e+00> : vector<8x32xf32>
    %3 = tpu.matmul %0, %2, %cst {dimension_numbers = #tpu.dot_dimension_numbers<[1], [0], [0], [1], [0, 0, 1, 1], [], []>} : vector<8x16xf32>, vector<16x32xf32>, vector<8x32xf32> -> vector<8x32xf32>
    %c1 = arith.constant 1 : index
    %c0_4 = arith.constant 0 : index
    %c0_5 = arith.constant 0 : index
    %4 = vector.load %arg3[%c1, %c0_4, %c0_5] : memref<2x16x32xf32, #tpu.memory_space<vmem>>, vector<1x16x32xf32>
    %5 = vector.shape_cast %4 : vector<1x16x32xf32> to vector<16x32xf32>
    %cst_6 = arith.constant dense<0.000000e+00> : vector<8x32xf32>
    %6 = tpu.matmul %0, %5, %cst_6 {dimension_numbers = #tpu.dot_dimension_numbers<[1], [0], [0], [1], [0, 0, 1, 1], [], []>} : vector<8x16xf32>, vector<16x32xf32>, vector<8x32xf32> -> vector<8x32xf32>
    %c0_7 = arith.constant 0 : index
    %c0_8 = arith.constant 0 : index
    %7 = vector.load %arg4[%c0_7, %c0_8] : memref<2x32xf32, #tpu.memory_space<vmem>>, vector<2x32xf32>
    %8 = vector.extract_strided_slice %7 {offsets = [0, 0], sizes = [1, 32], strides = [1, 1]} : vector<2x32xf32> to vector<1x32xf32>
    %9 = vector.broadcast %8 : vector<1x32xf32> to vector<8x32xf32>
    %10 = arith.addf %3, %9 : vector<8x32xf32>
    %11 = vector.extract_strided_slice %7 {offsets = [1, 0], sizes = [1, 32], strides = [1, 1]} : vector<2x32xf32> to vector<1x32xf32>
    %12 = vector.broadcast %11 : vector<1x32xf32> to vector<8x32xf32>
    %13 = arith.addf %6, %12 : vector<8x32xf32>
    %c0_9 = arith.constant 0 : index
    %c0_10 = arith.constant 0 : index
    %14 = vector.load %arg1[%c0_9, %c0_10] : memref<8x32xf32, #tpu.memory_space<vmem>>, vector<8x32xf32>
    %cst_11 = arith.constant dense<0.000000e+00> : vector<8xf32>
    %15 = vector.multi_reduction <add>, %14, %cst_11 [1] : vector<8x32xf32> to vector<8xf32>
    %16 = vector.shape_cast %15 : vector<8xf32> to vector<8x1xf32>
    %cst_12 = arith.constant 3.125000e-02 : f32
    %17 = vector.broadcast %cst_12 : f32 to vector<8x1xf32>
    %18 = arith.mulf %16, %17 : vector<8x1xf32>
    %19 = vector.broadcast %18 : vector<8x1xf32> to vector<8x32xf32>
    %20 = arith.subf %14, %19 : vector<8x32xf32>
    %21 = arith.mulf %20, %20 : vector<8x32xf32>
    %cst_13 = arith.constant dense<0.000000e+00> : vector<8xf32>
    %22 = vector.multi_reduction <add>, %21, %cst_13 [1] : vector<8x32xf32> to vector<8xf32>
    %23 = vector.shape_cast %22 : vector<8xf32> to vector<8x1xf32>
    %cst_14 = arith.constant 3.125000e-02 : f32
    %24 = vector.broadcast %cst_14 : f32 to vector<8x1xf32>
    %25 = arith.mulf %23, %24 : vector<8x1xf32>
    %cst_15 = arith.constant 9.99999996E-13 : f32
    %26 = vector.broadcast %cst_15 : f32 to vector<8x1xf32>
    %27 = arith.addf %25, %26 : vector<8x1xf32>
    %28 = math.rsqrt %27 : vector<8x1xf32>
    %29 = vector.broadcast %28 : vector<8x1xf32> to vector<8x32xf32>
    %30 = arith.mulf %20, %29 : vector<8x32xf32>
    %31 = arith.mulf %30, %10 : vector<8x32xf32>
    %32 = arith.addf %31, %13 : vector<8x32xf32>
    %c0_16 = arith.constant 0 : index
    %c0_17 = arith.constant 0 : index
    %33 = vector.load %arg5[%c0_16, %c0_17] : memref<8x32xf32, #tpu.memory_space<vmem>>, vector<8x32xf32>
    tpu.vector_store %arg5[%c0_16, %c0_17], %32 {strides = array<i32>} : memref<8x32xf32, #tpu.memory_space<vmem>>, vector<8x32xf32>,
    return
  }
  func.func @transform_0(%arg0: i32) -> (i32, i32) {
    %c0_i32 = arith.constant 0 : i32
    %c0_i32_0 = arith.constant 0 : i32
    return %arg0, %c0_i32 : i32, i32
  }
  func.func @transform_1(%arg0: i32) -> (i32, i32) {
    %c0_i32 = arith.constant 0 : i32
    %c0_i32_0 = arith.constant 0 : i32
    return %arg0, %c0_i32 : i32, i32
  }
  func.func @transform_2(%arg0: i32) -> (i32, i32, i32) {
    %c0_i32 = arith.constant 0 : i32
    %c0_i32_0 = arith.constant 0 : i32
    %c0_i32_1 = arith.constant 0 : i32
    %c0_i32_2 = arith.constant 0 : i32
    return %c0_i32, %c0_i32_0, %c0_i32_1 : i32, i32, i32
  }
  func.func @transform_3(%arg0: i32) -> (i32, i32) {
    %c0_i32 = arith.constant 0 : i32
    %c0_i32_0 = arith.constant 0 : i32
    %c0_i32_1 = arith.constant 0 : i32
    return %c0_i32, %c0_i32_0 : i32, i32
  }
  func.func @transform_4(%arg0: i32) -> (i32, i32) {
    %c0_i32 = arith.constant 0 : i32
    %c0_i32_0 = arith.constant 0 : i32
    return %arg0, %c0_i32 : i32, i32
  }
}

</mosaic_0001>

<llo_original>
// kernel: tpu_custom_call.1
$region0: #{tpu_custom_call.1}
  #allocation0 [shape = 'u32[]', space=smem, size = 0x4, offset = 0x4, fixed_abs, tag = 'smem constant byte address 0x4 - core index']
  #allocation1 [shape = 'u32[144,128]{1,0:T(1,128)}', space=vmem, size = 0x12000, scoped, tag = 'internal scratch']
  %s0 = inlined_call_operand.hbm [shape: f32[16,32], index: 0, kind: input, shape index: {}]
  %s1 = inlined_call_operand.hbm [shape: f32[16,16], index: 1, kind: input, shape index: {}]
  %s2 = inlined_call_operand.hbm [shape: f32[2,16,32], index: 2, kind: input, shape index: {}]
  %s3 = inlined_call_operand.vmem [shape: f32[2,32], index: 3, kind: input, shape index: {}]
  %s4 = inlined_call_operand.hbm [shape: f32[16,32], index: 4, kind: output, shape index: {}]
  %s5 = sld [smem:[#allocation0]]
  $region61: #{tpu_custom_call.1} parent=0
    _
  %s7 = ssub.s32 1, %s5
  %s8 = scalar_select 0, %s7, %s5
  $region1: #{tpu_custom_call.1} parent=0
    #allocation2 [shape = 'u8[8192]{0}', space=vmem, size = 0x2000, scoped, tag = 'input window, operand 0']
    #allocation3 [shape = 's32[2]{0}', space=sflag, size = 0x8, scoped, tag = 'scoped memory for tpu_custom_call.1']
    #allocation4 [shape = 's32[2]{0}', space=sflag, size = 0x8, scoped, tag = 'scoped memory for tpu_custom_call.1']
    #allocation5 [shape = 'u8[8192]{0}', space=vmem, size = 0x2000, scoped, tag = 'input window, operand 1']
    #allocation6 [shape = 's32[2]{0}', space=sflag, size = 0x8, scoped, tag = 'scoped memory for tpu_custom_call.1']
    #allocation7 [shape = 'u8[16384]{0}', space=vmem, size = 0x4000, scoped, tag = 'input window, operand 2, single buffered']
    #allocation8 [shape = 'u8[8192]{0}', space=vmem, size = 0x2000, scoped, tag = 'output window, operand 0']
    %9 = vsyncpa [#allocation3], 0
    %s10 = scalar_lea.sflag [#allocation3], 1
    %11 = vsyncpa %s10, 0
    %12 = vsyncpa [#allocation6], 0
    %s13 = scalar_lea.sflag [#allocation6], 1
    %14 = vsyncpa %s13, 0
    %15 = vsyncpa [#allocation4], 0
    %s16 = scalar_lea.sflag [#allocation4], 1
    %17 = vsyncpa %s16, 0
    loop: start=0, step=1, limit=4
    $region2: #{tpu_custom_call.1} parent=1 // loop_pre_header
      _
    $region3: #{tpu_custom_call.1} parent=1 // loop_header
      %s19 = sphi 0, %s23
      %p20 = scmp.ge.s32.totalorder %s19, 4
      %s29 = sphi 0, %s31
      %s32 = sphi 0, %s29
      %s33 = sphi 0, %s32
      %s49 = sphi 0, %s33
      %s55 = sphi 0, %s57
      %s58 = sphi 0, %s55
      %s59 = sphi 0, %s58
      %s75 = sphi 0, %s59
      %s79 = sphi 0, %s79
      %s81 = sphi 0, %s79
      %s82 = sphi 0, %s81
      %s96 = sphi 0, %s82
      %s100 = sphi 0, %s100
      %s102 = sphi 0, %s100
      %s103 = sphi 0, %s102
      %s117 = sphi 0, %s103
      %s123 = sphi 0, %s125
      %s126 = sphi 0, %s123
      %s127 = sphi 0, %s126
      %s143 = sphi 0, %s127
    $region4: #{tpu_custom_call.1} parent=1 // loop_header_branch
      %22 = sbr.rel (%p20) target = $region8
    $region5: #{tpu_custom_call.1} parent=1 // loop_body
      %s24 = ssub.s32 %s19, 1
      %s25 = ssub.s32 %s19, 2
      %s26 = sadd.s32 %s19, 1
      %s27 = ssub.s32 %s19, %s26
      %p28 = scmp.eq.s32.totalorder %s27, 0
      %s30 = sadd.s32 %s29, 1
      %s31 = scalar_select %p28, %s29, %s30
      %p34 = pneg %p28
      %p35 = scmp.eq.s32.totalorder %s19, 1
      %p36 = por %p34, %p35
      %p37 = scmp.ne.s32.totalorder %s29, %s32
      %p38 = scmp.eq.s32.totalorder %s19, 0
      %p39 = por %p37, %p38
      %p40 = scmp.ne.s32.totalorder %s29, %s32
      %p41 = scmp.eq.s32.totalorder %s24, 1
      %p42 = por %p40, %p41
      %p43 = scmp.ne.s32.totalorder %s32, %s33
      %p44 = scmp.eq.s32.totalorder %s24, 0
      %p45 = por %p43, %p44
      %p46 = scmp.ne.s32.totalorder %s32, %s33
      %p47 = scmp.eq.s32.totalorder %s25, 1
      %p48 = por %p46, %p47
      %p50 = scmp.ne.s32.totalorder %s33, %s49
      %p51 = scmp.eq.s32.totalorder %s25, 0
      %p52 = por %p50, %p51
      %s53 = ssub.s32 %s19, %s26
      %p54 = scmp.eq.s32.totalorder %s53, 0
      %s56 = sadd.s32 %s55, 1
      %s57 = scalar_select %p54, %s55, %s56
      %p60 = pneg %p54
      %p61 = scmp.eq.s32.totalorder %s19, 1
      %p62 = por %p60, %p61
      %p63 = scmp.ne.s32.totalorder %s55, %s58
      %p64 = scmp.eq.s32.totalorder %s19, 0
      %p65 = por %p63, %p64
      %p66 = scmp.ne.s32.totalorder %s55, %s58
      %p67 = scmp.eq.s32.totalorder %s24, 1
      %p68 = por %p66, %p67
      %p69 = scmp.ne.s32.totalorder %s58, %s59
      %p70 = scmp.eq.s32.totalorder %s24, 0
      %p71 = por %p69, %p70
      %p72 = scmp.ne.s32.totalorder %s58, %s59
      %p73 = scmp.eq.s32.totalorder %s25, 1
      %p74 = por %p72, %p73
      %p76 = scmp.ne.s32.totalorder %s59, %s75
      %p77 = scmp.eq.s32.totalorder %s25, 0
      %p78 = por %p76, %p77
      %s80 = sadd.s32 %s79, 1
      %p83 = scmp.eq.s32.totalorder %s19, 1
      %p84 = scmp.ne.s32.totalorder %s79, %s81
      %p85 = scmp.eq.s32.totalorder %s19, 0
      %p86 = por %p84, %p85
      %p87 = scmp.ne.s32.totalorder %s79, %s81
      %p88 = scmp.eq.s32.totalorder %s24, 1
      %p89 = por %p87, %p88
      %p90 = scmp.ne.s32.totalorder %s81, %s82
      %p91 = scmp.eq.s32.totalorder %s24, 0
      %p92 = por %p90, %p91
      %p93 = scmp.ne.s32.totalorder %s81, %s82
      %p94 = scmp.eq.s32.totalorder %s25, 1
      %p95 = por %p93, %p94
      %p97 = scmp.ne.s32.totalorder %s82, %s96
      %p98 = scmp.eq.s32.totalorder %s25, 0
      %p99 = por %p97, %p98
      %s101 = sadd.s32 %s100, 1
      %p104 = scmp.eq.s32.totalorder %s19, 1
      %p105 = scmp.ne.s32.totalorder %s100, %s102
      %p106 = scmp.eq.s32.totalorder %s19, 0
      %p107 = por %p105, %p106
      %p108 = scmp.ne.s32.totalorder %s100, %s102
      %p109 = scmp.eq.s32.totalorder %s24, 1
      %p110 = por %p108, %p109
      %p111 = scmp.ne.s32.totalorder %s102, %s103
      %p112 = scmp.eq.s32.totalorder %s24, 0
      %p113 = por %p111, %p112
      %p114 = scmp.ne.s32.totalorder %s102, %s103
      %p115 = scmp.eq.s32.totalorder %s25, 1
      %p116 = por %p114, %p115
      %p118 = scmp.ne.s32.totalorder %s103, %s117
      %p119 = scmp.eq.s32.totalorder %s25, 0
      %p120 = por %p118, %p119
      %s121 = ssub.s32 %s19, %s26
      %p122 = scmp.eq.s32.totalorder %s121, 0
      %s124 = sadd.s32 %s123, 1
      %s125 = scalar_select %p122, %s123, %s124
      %p128 = pneg %p122
      %p129 = scmp.eq.s32.totalorder %s19, 1
      %p130 = por %p128, %p129
      %p131 = scmp.ne.s32.totalorder %s123, %s126
      %p132 = scmp.eq.s32.totalorder %s19, 0
      %p133 = por %p131, %p132
      %p134 = scmp.ne.s32.totalorder %s123, %s126
      %p135 = scmp.eq.s32.totalorder %s24, 1
      %p136 = por %p134, %p135
      %p137 = scmp.ne.s32.totalorder %s126, %s127
      %p138 = scmp.eq.s32.totalorder %s24, 0
      %p139 = por %p137, %p138
      %p140 = scmp.ne.s32.totalorder %s126, %s127
      %p141 = scmp.eq.s32.totalorder %s25, 1
      %p142 = por %p140, %p141
      %p144 = scmp.ne.s32.totalorder %s127, %s143
      %p145 = scmp.eq.s32.totalorder %s25, 0
      %p146 = por %p144, %p145
      %p147 = scmp.le.s32.totalorder 1, %s19
      %p148 = scmp.lt.s32.totalorder %s19, 3
      %p149 = pnand %p147, %p148
      %p150 = pneg %p149
      // Predicated region
      $region9: #{tpu_custom_call.1} parent=5 // pred_check
        _
      $region10: #{tpu_custom_call.1} parent=5 // pred_check_branch
        %152 = sbr.rel (%p149) target = $region12
      $region11: #{tpu_custom_call.1} parent=5 // pred_region
        %s153 = ssub.s32 %s19, 1
        // Predicated region
        $region13: #{tpu_custom_call.1} parent=11 // pred_check
          %p154 = pneg %p92
        $region14: #{tpu_custom_call.1} parent=11 // pred_check_branch
          %156 = sbr.rel (%p154) target = $region16
        $region15: #{tpu_custom_call.1} parent=11 // pred_region
          %s158 = ssub.s32 512, 512
          %159 = vsyncadd [#allocation6], %s158
          %s160 = sshll.u32 [#allocation7], 4
          %s161 = int_to_ptr.vmem [resolvable:$true] %s160
          %166 = dma.hbm_to_vmem [thread:$0]  %s2, 512, %s161, [#allocation6], 128, 128, 8
        $region16: #{tpu_custom_call.1} parent=11 // pred_fallthru
          _
        // Predicated region
        $region17: #{tpu_custom_call.1} parent=11 // pred_check
          %p167 = pneg %p113
        $region18: #{tpu_custom_call.1} parent=11 // pred_check_branch
          %169 = sbr.rel (%p167) target = $region20
        $region19: #{tpu_custom_call.1} parent=11 // pred_region
          _
        $region20: #{tpu_custom_call.1} parent=11 // pred_fallthru
          _
      $region12: #{tpu_custom_call.1} parent=5 // pred_fallthru
        _
      %p170 = scmp.lt.s32.totalorder %s19, 2
      // Predicated region
      $region21: #{tpu_custom_call.1} parent=5 // pred_check
        %p171 = pneg %p170
      $region22: #{tpu_custom_call.1} parent=5 // pred_check_branch
        %173 = sbr.rel (%p171) target = $region24
      $region23: #{tpu_custom_call.1} parent=5 // pred_region
        // Predicated region
        $region25: #{tpu_custom_call.1} parent=23 // pred_check
          %p174 = pneg %p39
        $region26: #{tpu_custom_call.1} parent=23 // pred_check_branch
          %176 = sbr.rel (%p174) target = $region28
        $region27: #{tpu_custom_call.1} parent=23 // pred_region
          %s177 = sand.u32 %s29, 1
          %s178 = scalar_lea.sflag [#allocation3], %s177
          %s179 = sand.u32 %s29, 1
          %s180 = smul.addr %s179, 8
          %s181 = scalar_lea.vmem [#allocation2], %s180
          %s183 = ssub.s32 128, 128
          %184 = vsyncadd %s178, %s183
          %s185 = smul.addr %s19, 128
          %s186 = scalar_lea.hbm %s0, %s185
          %s188 = sshll.u32 %s181, 4
          %s189 = int_to_ptr.vmem [resolvable:$true] %s188
          %191 = dma.hbm_to_vmem [thread:$0]  %s186, 128, %s189, %s178
        $region28: #{tpu_custom_call.1} parent=23 // pred_fallthru
          _
        // Predicated region
        $region29: #{tpu_custom_call.1} parent=23 // pred_check
          %p192 = pneg %p65
        $region30: #{tpu_custom_call.1} parent=23 // pred_check_branch
          %194 = sbr.rel (%p192) target = $region32
        $region31: #{tpu_custom_call.1} parent=23 // pred_region
          %s195 = sand.u32 %s19, 1
          %s196 = scalar_lea.sflag [#allocation6], %s195
          %s197 = sand.u32 %s55, 1
          %s198 = smul.addr %s197, 8
          %s199 = scalar_lea.vmem [#allocation5], %s198
          %s201 = ssub.s32 128, 128
          %202 = vsyncadd %s196, %s201
          %s203 = smul.addr %s19, 128
          %s204 = scalar_lea.hbm %s1, %s203
          %s206 = sshll.u32 %s199, 4
          %s207 = int_to_ptr.vmem [resolvable:$true] %s206
          %209 = dma.hbm_to_vmem [thread:$0]  %s204, 128, %s207, %s196
        $region32: #{tpu_custom_call.1} parent=23 // pred_fallthru
          _
      $region24: #{tpu_custom_call.1} parent=5 // pred_fallthru
        _
      %p210 = scmp.le.s32.totalorder 1, %s19
      %p211 = scmp.lt.s32.totalorder %s19, 3
      %p212 = pnand %p210, %p211
      %p213 = pneg %p212
      // Predicated region
      $region33: #{tpu_custom_call.1} parent=5 // pred_check
        _
      $region34: #{tpu_custom_call.1} parent=5 // pred_check_branch
        %215 = sbr.rel (%p212) target = $region36
      $region35: #{tpu_custom_call.1} parent=5 // pred_region
        %s216 = ssub.s32 %s19, 1
        %s217 = sand.u32 %s32, 1
        %s218 = scalar_lea.sflag [#allocation3], %s217
        %s219 = sand.u32 %s32, 1
        %s220 = smul.addr %s219, 8
        %s221 = scalar_lea.vmem [#allocation2], %s220
        // Predicated region
        $region37: #{tpu_custom_call.1} parent=35 // pred_check
          %p222 = pneg %p45
        $region38: #{tpu_custom_call.1} parent=35 // pred_check_branch
          %224 = sbr.rel (%p222) target = $region40
        $region39: #{tpu_custom_call.1} parent=35 // pred_region
          %225 = dma.done %s218, 128
        $region40: #{tpu_custom_call.1} parent=35 // pred_fallthru
          _
        %s226 = sand.u32 %s24, 1
        %s227 = scalar_lea.sflag [#allocation6], %s226
        %s228 = sand.u32 %s58, 1
        %s229 = smul.addr %s228, 8
        %s230 = scalar_lea.vmem [#allocation5], %s229
        // Predicated region
        $region41: #{tpu_custom_call.1} parent=35 // pred_check
          %p231 = pneg %p71
        $region42: #{tpu_custom_call.1} parent=35 // pred_check_branch
          %233 = sbr.rel (%p231) target = $region44
        $region43: #{tpu_custom_call.1} parent=35 // pred_region
          %234 = dma.done %s227, 128
        $region44: #{tpu_custom_call.1} parent=35 // pred_fallthru
          _
        // Predicated region
        $region45: #{tpu_custom_call.1} parent=35 // pred_check
          %p235 = pneg %p92
        $region46: #{tpu_custom_call.1} parent=35 // pred_check_branch
          %237 = sbr.rel (%p235) target = $region48
        $region47: #{tpu_custom_call.1} parent=35 // pred_region
          %238 = dma.done [#allocation6], 512
        $region48: #{tpu_custom_call.1} parent=35 // pred_fallthru
          _
        %s239 = sand.u32 %s32, 1
        %s240 = scalar_lea.sflag [#allocation3], %s239
        %s241 = sand.u32 %s32, 1
        %s242 = smul.addr %s241, 8
        %s243 = scalar_lea.vmem [#allocation2], %s242
        %p244 = pneg %p45
        %p245 = pneg %p42
        %s246 = sand.u32 %s24, 1
        %s247 = scalar_lea.sflag [#allocation6], %s246
        %s248 = sand.u32 %s58, 1
        %s249 = smul.addr %s248, 8
        %s250 = scalar_lea.vmem [#allocation5], %s249
        %p251 = pneg %p71
        %p252 = pneg %p68
        %p253 = pneg %p92
        %p254 = pneg %p89
        %p255 = pneg %p113
        %p256 = pneg %p110
        %p257 = pneg %p139
        %p258 = pneg %p136
        %s259 = sand.u32 %s126, 1
        %s260 = scalar_lea.sflag [#allocation4], %s259
        %s261 = sand.u32 %s126, 1
        %s262 = smul.addr %s261, 8
        %s263 = scalar_lea.vmem [#allocation8], %s262
        %v264 = vld [vmem:[%s230] sm:$0xff]
        %v265 = vld [vmem:[#allocation7] sm:$0xff]
        %v266 = vld [vmem:[#allocation7 + $0x8] sm:$0xff]
        %s267 = scalar_lea.vmem [#allocation7], 16
        %v268 = vld [vmem:[%s267] sm:$0xff]
        %v269 = vld [vmem:[%s267 + $0x8] sm:$0xff]
        %v270 = vld [vmem:[%s3] sm:$0x3]
        %v271 = vlaneseq
        %v272 = vshrl.u32 %v271, 7
        %v273 = vsub.s32 0, %v272
        %v274 = vrot.slane %v270, %v273
        %vm275 = vcmask 130048
        %v277 = vsel %vm275, %v264, 0
        %279 = vmatprep.subr.mxu0 0.0
        %280 = vmatpush1.msra.mxu0 %v265
        %281 = vmatprep.subr.mxu0 0.0
        %282 = vmatpush1.msra.mxu0 %v266
        %283 = vmatprep.subr.mxu0 0.0
        %284 = vmatpush1.msra.mxu0 0.0
        %285 = vmatprep.subr.mxu0 0.0
        %286 = vmatpush1.msra.mxu0 0.0
        %287 = vmatprep.subr.mxu0 0.0
        %288 = vmatpush1.msra.mxu0 0.0
        %289 = vmatprep.subr.mxu0 0.0
        %290 = vmatpush1.msra.mxu0 0.0
        %291 = vmatprep.subr.mxu0 0.0
        %292 = vmatpush1.msra.mxu0 0.0
        %293 = vmatprep.subr.mxu0 0.0
        %294 = vmatpush1.msra.mxu0 0.0
        %295 = vmatprep.subr.mxu0 0.0
        %296 = vmatpush1.msra.mxu0 0.0
        %297 = vmatprep.subr.mxu0 0.0
        %298 = vmatpush1.msra.mxu0 0.0
        %299 = vmatprep.subr.mxu0 0.0
        %300 = vmatpush1.msra.mxu0 0.0
        %301 = vmatprep.subr.mxu0 0.0
        %302 = vmatpush1.msra.mxu0 0.0
        %303 = vmatprep.subr.mxu0 0.0
        %304 = vmatpush1.msra.mxu0 0.0
        %305 = vmatprep.subr.mxu0 0.0
        %306 = vmatpush1.msra.mxu0 0.0
        %307 = vmatprep.subr.mxu0 0.0
        %308 = vmatpush1.msra.mxu0 0.0
        %309 = vmatprep.subr.mxu0 0.0
        %310 = vmatpush1.msra.mxu0 0.0
        %311 = vmatprep.subr.mxu0 0.0
        %312 = vmatpush1.msra.mxu0 0.0
        %313 = vmatprep.subr.mxu0 0.0
        %314 = vmatpush1.msra.mxu0 0.0
        %315 = vmatprep.subr.mxu0 0.0
        %316 = vmatpush1.msra.mxu0 0.0
        %317 = vmatprep.subr.mxu0 0.0
        %318 = vmatpush1.msra.mxu0 0.0
        %319 = vmatprep.subr.mxu0 0.0
        %320 = vmatpush1.msra.mxu0 0.0
        %321 = vmatprep.subr.mxu0 0.0
        %322 = vmatpush1.msra.mxu0 0.0
        %323 = vmatprep.subr.mxu0 0.0
        %324 = vmatpush1.msra.mxu0 0.0
        %325 = vmatprep.subr.mxu0 0.0
        %326 = vmatpush1.msra.mxu0 0.0
        %327 = vmatprep.subr.mxu0 0.0
        %328 = vmatpush1.msra.mxu0 0.0
        %329 = vmatprep.subr.mxu0 0.0
        %330 = vmatpush1.msra.mxu0 0.0
        %331 = vmatprep.subr.mxu0 0.0
        %332 = vmatpush1.msra.mxu0 0.0
        %333 = vmatprep.subr.mxu0 0.0
        %334 = vmatpush1.msra.mxu0 0.0
        %335 = vmatprep.subr.mxu0 0.0
        %336 = vmatpush1.msra.mxu0 0.0
        %337 = vmatprep.subr.mxu0 0.0
        %338 = vmatpush1.msra.mxu0 0.0
        %339 = vmatprep.subr.mxu0 0.0
        %340 = vmatpush1.msra.mxu0 0.0
        %341 = vmatprep.subr.mxu0 0.0
        %342 = vmatpush1.msra.mxu0 0.0
        %343 = vmatprep.mubr.f32.mxu0 0.0
        %344 = vmatmul.mubr.f32.gmra.mrb[0].mxu0 %v277
        %v345 = vpop.f32.mrb[0].mxu0
        %v346 = vadd.f32 %v274, %v345
        %v347 = vpop.f32.mrb[0].mxu0
        %348 = vdwg.mxu0
        %v349 = vlaneseq
        %v350 = vshrl.u32 %v349, 7
        %v351 = vsub.s32 1, %v350
        %v352 = vrot.slane %v270, %v351
        %353 = vmatprep.subr.mxu0 0.0
        %354 = vmatpush1.msra.mxu0 %v268
        %355 = vmatprep.subr.mxu0 0.0
        %356 = vmatpush1.msra.mxu0 %v269
        %357 = vmatprep.subr.mxu0 0.0
        %358 = vmatpush1.msra.mxu0 0.0
        %359 = vmatprep.subr.mxu0 0.0
        %360 = vmatpush1.msra.mxu0 0.0
        %361 = vmatprep.subr.mxu0 0.0
        %362 = vmatpush1.msra.mxu0 0.0
        %363 = vmatprep.subr.mxu0 0.0
        %364 = vmatpush1.msra.mxu0 0.0
        %365 = vmatprep.subr.mxu0 0.0
        %366 = vmatpush1.msra.mxu0 0.0
        %367 = vmatprep.subr.mxu0 0.0
        %368 = vmatpush1.msra.mxu0 0.0
        %369 = vmatprep.subr.mxu0 0.0
        %370 = vmatpush1.msra.mxu0 0.0
        %371 = vmatprep.subr.mxu0 0.0
        %372 = vmatpush1.msra.mxu0 0.0
        %373 = vmatprep.subr.mxu0 0.0
        %374 = vmatpush1.msra.mxu0 0.0
        %375 = vmatprep.subr.mxu0 0.0
        %376 = vmatpush1.msra.mxu0 0.0
        %377 = vmatprep.subr.mxu0 0.0
        %378 = vmatpush1.msra.mxu0 0.0
        %379 = vmatprep.subr.mxu0 0.0
        %380 = vmatpush1.msra.mxu0 0.0
        %381 = vmatprep.subr.mxu0 0.0
        %382 = vmatpush1.msra.mxu0 0.0
        %383 = vmatprep.subr.mxu0 0.0
        %384 = vmatpush1.msra.mxu0 0.0
        %385 = vmatprep.subr.mxu0 0.0
        %386 = vmatpush1.msra.mxu0 0.0
        %387 = vmatprep.subr.mxu0 0.0
        %388 = vmatpush1.msra.mxu0 0.0
        %389 = vmatprep.subr.mxu0 0.0
        %390 = vmatpush1.msra.mxu0 0.0
        %391 = vmatprep.subr.mxu0 0.0
        %392 = vmatpush1.msra.mxu0 0.0
        %393 = vmatprep.subr.mxu0 0.0
        %394 = vmatpush1.msra.mxu0 0.0
        %395 = vmatprep.subr.mxu0 0.0
        %396 = vmatpush1.msra.mxu0 0.0
        %397 = vmatprep.subr.mxu0 0.0
        %398 = vmatpush1.msra.mxu0 0.0
        %399 = vmatprep.subr.mxu0 0.0
        %400 = vmatpush1.msra.mxu0 0.0
        %401 = vmatprep.subr.mxu0 0.0
        %402 = vmatpush1.msra.mxu0 0.0
        %403 = vmatprep.subr.mxu0 0.0
        %404 = vmatpush1.msra.mxu0 0.0
        %405 = vmatprep.subr.mxu0 0.0
        %406 = vmatpush1.msra.mxu0 0.0
        %407 = vmatprep.subr.mxu0 0.0
        %408 = vmatpush1.msra.mxu0 0.0
        %409 = vmatprep.subr.mxu0 0.0
        %410 = vmatpush1.msra.mxu0 0.0
        %411 = vmatprep.subr.mxu0 0.0
        %412 = vmatpush1.msra.mxu0 0.0
        %413 = vmatprep.subr.mxu0 0.0
        %414 = vmatpush1.msra.mxu0 0.0
        %415 = vmatprep.subr.mxu0 0.0
        %416 = vmatpush1.msra.mxu0 0.0
        %417 = vmatprep.mubr.f32.mxu0 0.0
        %418 = vmatmul.mubr.f32.gmra.mrb[0].mxu0 %v277
        %v419 = vpop.f32.mrb[0].mxu0
        %v420 = vadd.f32 %v352, %v419
        %v421 = vpop.f32.mrb[0].mxu0
        %422 = vdwg.mxu0
        %v423 = vld [vmem:[%s221] sm:$0xff]
        %vm424 = vcmask 261120
        %v425 = vsel %vm424, %v423, 0.0
        %426 = vadd.xlane.f32.xlu0 %v425
        %v427 = vpop.xlane.xlu0 %426
        %v428 = vmul.f32 %v427, 0.03125
        %v429 = vsub.f32 %v423, %v428
        %v430 = vmul.f32 %v429, %v429
        %v431 = vsel %vm424, %v430, 0.0
        %432 = vadd.xlane.f32.xlu0 %v431
        %v433 = vpop.xlane.xlu0 %432
        %v434 = vmul.f32 %v433, 0.03125
        %v435 = vadd.f32 %v434, 1e-12
        %v436 = vrsqrt.pop %v435
        %v437 = vmul.f32 %v429, %v436
        %v438 = vmul.f32 %v437, %v346
        %v439 = vadd.f32 %v438, %v420
        %440 = vst.msk [vmem:[%s263] sm:$0xff] %vm424, %v439
        %s441 = sand.u32 %s126, 1
        %s442 = scalar_lea.sflag [#allocation4], %s441
        %s443 = sand.u32 %s126, 1
        %s444 = smul.addr %s443, 8
        %s445 = scalar_lea.vmem [#allocation8], %s444
        // Predicated region
        $region49: #{tpu_custom_call.1} parent=35 // pred_check
          %p446 = pneg %p136
        $region50: #{tpu_custom_call.1} parent=35 // pred_check_branch
          %448 = sbr.rel (%p446) target = $region52
        $region51: #{tpu_custom_call.1} parent=35 // pred_region
          %s450 = ssub.s32 128, 128
          %451 = vsyncadd %s442, %s450
          %s452 = smul.addr %s24, 128
          %s453 = scalar_lea.hbm %s4, %s452
          %s455 = sshll.u32 %s445, 4
          %s456 = int_to_ptr.vmem [resolvable:$true] %s455
          %458 = dma.vmem_to_hbm [thread:$0]  %s456, 128, %s453, %s442
        $region52: #{tpu_custom_call.1} parent=35 // pred_fallthru
          _
      $region36: #{tpu_custom_call.1} parent=5 // pred_fallthru
        _
      %p459 = scmp.le.s32.totalorder 2, %s19
      // Predicated region
      $region53: #{tpu_custom_call.1} parent=5 // pred_check
        %p460 = pneg %p459
      $region54: #{tpu_custom_call.1} parent=5 // pred_check_branch
        %462 = sbr.rel (%p460) target = $region56
      $region55: #{tpu_custom_call.1} parent=5 // pred_region
        %s463 = ssub.s32 %s19, 2
        // Predicated region
        $region57: #{tpu_custom_call.1} parent=55 // pred_check
          %p464 = pneg %p142
        $region58: #{tpu_custom_call.1} parent=55 // pred_check_branch
          %466 = sbr.rel (%p464) target = $region60
        $region59: #{tpu_custom_call.1} parent=55 // pred_region
          %s467 = sand.u32 %s127, 1
          %s468 = scalar_lea.sflag [#allocation4], %s467
          %s469 = sand.u32 %s127, 1
          %s470 = smul.addr %s469, 8
          %s471 = scalar_lea.vmem [#allocation8], %s470
          %472 = dma.done %s468, 128
        $region60: #{tpu_custom_call.1} parent=55 // pred_fallthru
          _
      $region56: #{tpu_custom_call.1} parent=5 // pred_fallthru
        _
    $region6: #{tpu_custom_call.1} parent=1 // loop_footer
      %s23 = sadd.s32 1, %s19
    $region7: #{tpu_custom_call.1} parent=1 // loop_footer_branch
      %18 = sbr.rel target = $region3
    $region8: #{tpu_custom_call.1} parent=1 // loop_exit
      _
    %473 = vsyncpa [#allocation3], 1
    %s474 = scalar_lea.sflag [#allocation3], 1
    %475 = vsyncpa %s474, 1
    %476 = vsyncpa [#allocation6], 1
    %s477 = scalar_lea.sflag [#allocation6], 1
    %478 = vsyncpa %s477, 1
    %479 = vsyncpa [#allocation4], 1
    %s480 = scalar_lea.sflag [#allocation4], 1
    %481 = vsyncpa %s480, 1

// kernel: tpu_custom_call.1
$region0: #{tpu_custom_call.1}
  #allocation0 [shape = 'u32[]', space=smem, size = 0x4, offset = 0x4, fixed_abs, tag = 'smem constant byte address 0x4 - core index']
  #allocation1 [shape = 'u32[144,128]{1,0:T(1,128)}', space=vmem, size = 0x12000, scoped, tag = 'internal scratch']
  %s0 = inlined_call_operand.hbm [shape: f32[16,32], index: 0, kind: input, shape index: {}]
  %s1 = inlined_call_operand.hbm [shape: f32[16,16], index: 1, kind: input, shape index: {}]
  %s2 = inlined_call_operand.hbm [shape: f32[2,16,32], index: 2, kind: input, shape index: {}]
  %s3 = inlined_call_operand.vmem [shape: f32[2,32], index: 3, kind: input, shape index: {}]
  %s4 = inlined_call_operand.hbm [shape: f32[16,32], index: 4, kind: output, shape index: {}]
  %s5 = sld [smem:[#allocation0]]
  $region61: #{tpu_custom_call.1} parent=0
    _
  %s7 = ssub.s32 1, %s5
  %s8 = scalar_select 0, %s7, %s5
  $region1: #{tpu_custom_call.1} parent=0
    #allocation2 [shape = 'u8[8192]{0}', space=vmem, size = 0x2000, scoped, tag = 'input window, operand 0']
    #allocation3 [shape = 's32[2]{0}', space=sflag, size = 0x8, scoped, tag = 'scoped memory for tpu_custom_call.1']
    #allocation4 [shape = 's32[2]{0}', space=sflag, size = 0x8, scoped, tag = 'scoped memory for tpu_custom_call.1']
    #allocation5 [shape = 'u8[8192]{0}', space=vmem, size = 0x2000, scoped, tag = 'input window, operand 1']
    #allocation6 [shape = 's32[2]{0}', space=sflag, size = 0x8, scoped, tag = 'scoped memory for tpu_custom_call.1']
    #allocation7 [shape = 'u8[16384]{0}', space=vmem, size = 0x4000, scoped, tag = 'input window, operand 2, single buffered']
    #allocation8 [shape = 'u8[8192]{0}', space=vmem, size = 0x2000, scoped, tag = 'output window, operand 0']
    %9 = vsyncpa [#allocation3], 0
    %s10 = scalar_lea.sflag [#allocation3], 1
    %11 = vsyncpa %s10, 0
    %12 = vsyncpa [#allocation6], 0
    %s13 = scalar_lea.sflag [#allocation6], 1
    %14 = vsyncpa %s13, 0
    %15 = vsyncpa [#allocation4], 0
    %s16 = scalar_lea.sflag [#allocation4], 1
    %17 = vsyncpa %s16, 0
    loop: start=0, step=1, limit=4
    $region2: #{tpu_custom_call.1} parent=1 // loop_pre_header
      _
    $region3: #{tpu_custom_call.1} parent=1 // loop_header
      %s19 = sphi 0, %s23
      %p20 = scmp.ge.s32.totalorder %s19, 4
      %s29 = sphi 0, %s31
      %s32 = sphi 0, %s29
      %s33 = sphi 0, %s32
      %s49 = sphi 0, %s33
      %s55 = sphi 0, %s57
      %s58 = sphi 0, %s55
      %s59 = sphi 0, %s58
      %s75 = sphi 0, %s59
      %s79 = sphi 0, %s79
      %s81 = sphi 0, %s79
      %s82 = sphi 0, %s81
      %s96 = sphi 0, %s82
      %s100 = sphi 0, %s100
      %s102 = sphi 0, %s100
      %s103 = sphi 0, %s102
      %s117 = sphi 0, %s103
      %s123 = sphi 0, %s125
      %s126 = sphi 0, %s123
      %s127 = sphi 0, %s126
      %s143 = sphi 0, %s127
    $region4: #{tpu_custom_call.1} parent=1 // loop_header_branch
      %22 = sbr.rel (%p20) target = $region8
    $region5: #{tpu_custom_call.1} parent=1 // loop_body
      %s24 = ssub.s32 %s19, 1
      %s25 = ssub.s32 %s19, 2
      %s26 = sadd.s32 %s19, 1
      %s27 = ssub.s32 %s19, %s26
      %p28 = scmp.eq.s32.totalorder %s27, 0
      %s30 = sadd.s32 %s29, 1
      %s31 = scalar_select %p28, %s29, %s30
      %p34 = pneg %p28
      %p35 = scmp.eq.s32.totalorder %s19, 1
      %p36 = por %p34, %p35
      %p37 = scmp.ne.s32.totalorder %s29, %s32
      %p38 = scmp.eq.s32.totalorder %s19, 0
      %p39 = por %p37, %p38
      %p40 = scmp.ne.s32.totalorder %s29, %s32
      %p41 = scmp.eq.s32.totalorder %s24, 1
      %p42 = por %p40, %p41
      %p43 = scmp.ne.s32.totalorder %s32, %s33
      %p44 = scmp.eq.s32.totalorder %s24, 0
      %p45 = por %p43, %p44
      %p46 = scmp.ne.s32.totalorder %s32, %s33
      %p47 = scmp.eq.s32.totalorder %s25, 1
      %p48 = por %p46, %p47
      %p50 = scmp.ne.s32.totalorder %s33, %s49
      %p51 = scmp.eq.s32.totalorder %s25, 0
      %p52 = por %p50, %p51
      %s53 = ssub.s32 %s19, %s26
      %p54 = scmp.eq.s32.totalorder %s53, 0
      %s56 = sadd.s32 %s55, 1
      %s57 = scalar_select %p54, %s55, %s56
      %p60 = pneg %p54
      %p61 = scmp.eq.s32.totalorder %s19, 1
      %p62 = por %p60, %p61
      %p63 = scmp.ne.s32.totalorder %s55, %s58
      %p64 = scmp.eq.s32.totalorder %s19, 0
      %p65 = por %p63, %p64
      %p66 = scmp.ne.s32.totalorder %s55, %s58
      %p67 = scmp.eq.s32.totalorder %s24, 1
      %p68 = por %p66, %p67
      %p69 = scmp.ne.s32.totalorder %s58, %s59
      %p70 = scmp.eq.s32.totalorder %s24, 0
      %p71 = por %p69, %p70
      %p72 = scmp.ne.s32.totalorder %s58, %s59
      %p73 = scmp.eq.s32.totalorder %s25, 1
      %p74 = por %p72, %p73
      %p76 = scmp.ne.s32.totalorder %s59, %s75
      %p77 = scmp.eq.s32.totalorder %s25, 0
      %p78 = por %p76, %p77
      %s80 = sadd.s32 %s79, 1
      %p83 = scmp.eq.s32.totalorder %s19, 1
      %p84 = scmp.ne.s32.totalorder %s79, %s81
      %p85 = scmp.eq.s32.totalorder %s19, 0
      %p86 = por %p84, %p85
      %p87 = scmp.ne.s32.totalorder %s79, %s81
      %p88 = scmp.eq.s32.totalorder %s24, 1
      %p89 = por %p87, %p88
      %p90 = scmp.ne.s32.totalorder %s81, %s82
      %p91 = scmp.eq.s32.totalorder %s24, 0
      %p92 = por %p90, %p91
      %p93 = scmp.ne.s32.totalorder %s81, %s82
      %p94 = scmp.eq.s32.totalorder %s25, 1
      %p95 = por %p93, %p94
      %p97 = scmp.ne.s32.totalorder %s82, %s96
      %p98 = scmp.eq.s32.totalorder %s25, 0
      %p99 = por %p97, %p98
      %s101 = sadd.s32 %s100, 1
      %p104 = scmp.eq.s32.totalorder %s19, 1
      %p105 = scmp.ne.s32.totalorder %s100, %s102
      %p106 = scmp.eq.s32.totalorder %s19, 0
      %p107 = por %p105, %p106
      %p108 = scmp.ne.s32.totalorder %s100, %s102
      %p109 = scmp.eq.s32.totalorder %s24, 1
      %p110 = por %p108, %p109
      %p111 = scmp.ne.s32.totalorder %s102, %s103
      %p112 = scmp.eq.s32.totalorder %s24, 0
      %p113 = por %p111, %p112
      %p114 = scmp.ne.s32.totalorder %s102, %s103
      %p115 = scmp.eq.s32.totalorder %s25, 1
      %p116 = por %p114, %p115
      %p118 = scmp.ne.s32.totalorder %s103, %s117
      %p119 = scmp.eq.s32.totalorder %s25, 0
      %p120 = por %p118, %p119
      %s121 = ssub.s32 %s19, %s26
      %p122 = scmp.eq.s32.totalorder %s121, 0
      %s124 = sadd.s32 %s123, 1
      %s125 = scalar_select %p122, %s123, %s124
      %p128 = pneg %p122
      %p129 = scmp.eq.s32.totalorder %s19, 1
      %p130 = por %p128, %p129
      %p131 = scmp.ne.s32.totalorder %s123, %s126
      %p132 = scmp.eq.s32.totalorder %s19, 0
      %p133 = por %p131, %p132
      %p134 = scmp.ne.s32.totalorder %s123, %s126
      %p135 = scmp.eq.s32.totalorder %s24, 1
      %p136 = por %p134, %p135
      %p137 = scmp.ne.s32.totalorder %s126, %s127
      %p138 = scmp.eq.s32.totalorder %s24, 0
      %p139 = por %p137, %p138
      %p140 = scmp.ne.s32.totalorder %s126, %s127
      %p141 = scmp.eq.s32.totalorder %s25, 1
      %p142 = por %p140, %p141
      %p144 = scmp.ne.s32.totalorder %s127, %s143
      %p145 = scmp.eq.s32.totalorder %s25, 0
      %p146 = por %p144, %p145
      %p147 = scmp.le.s32.totalorder 1, %s19
      %p148 = scmp.lt.s32.totalorder %s19, 3
      %p149 = pnand %p147, %p148
      %p150 = pneg %p149
      // Predicated region
      $region9: #{tpu_custom_call.1} parent=5 // pred_check
        _
      $region10: #{tpu_custom_call.1} parent=5 // pred_check_branch
        %152 = sbr.rel (%p149) target = $region12
      $region11: #{tpu_custom_call.1} parent=5 // pred_region
        %s153 = ssub.s32 %s19, 1
        // Predicated region
        $region13: #{tpu_custom_call.1} parent=11 // pred_check
          %p154 = pneg %p92
        $region14: #{tpu_custom_call.1} parent=11 // pred_check_branch
          %156 = sbr.rel (%p154) target = $region16
        $region15: #{tpu_custom_call.1} parent=11 // pred_region
          %s158 = ssub.s32 512, 512
          %159 = vsyncadd [#allocation6], %s158
          %s160 = sshll.u32 [#allocation7], 4
          %s161 = int_to_ptr.vmem [resolvable:$true] %s160
          %166 = dma.hbm_to_vmem [thread:$0]  %s2, 512, %s161, [#allocation6], 128, 128, 8
        $region16: #{tpu_custom_call.1} parent=11 // pred_fallthru
          _
        // Predicated region
        $region17: #{tpu_custom_call.1} parent=11 // pred_check
          %p167 = pneg %p113
        $region18: #{tpu_custom_call.1} parent=11 // pred_check_branch
          %169 = sbr.rel (%p167) target = $region20
        $region19: #{tpu_custom_call.1} parent=11 // pred_region
          _
        $region20: #{tpu_custom_call.1} parent=11 // pred_fallthru
          _
      $region12: #{tpu_custom_call.1} parent=5 // pred_fallthru
        _
      %p170 = scmp.lt.s32.totalorder %s19, 2
      // Predicated region
      $region21: #{tpu_custom_call.1} parent=5 // pred_check
        %p171 = pneg %p170
      $region22: #{tpu_custom_call.1} parent=5 // pred_check_branch
        %173 = sbr.rel (%p171) target = $region24
      $region23: #{tpu_custom_call.1} parent=5 // pred_region
        // Predicated region
        $region25: #{tpu_custom_call.1} parent=23 // pred_check
          %p174 = pneg %p39
        $region26: #{tpu_custom_call.1} parent=23 // pred_check_branch
          %176 = sbr.rel (%p174) target = $region28
        $region27: #{tpu_custom_call.1} parent=23 // pred_region
          %s177 = sand.u32 %s29, 1
          %s178 = scalar_lea.sflag [#allocation3], %s177
          %s179 = sand.u32 %s29, 1
          %s180 = smul.addr %s179, 8
          %s181 = scalar_lea.vmem [#allocation2], %s180
          %s183 = ssub.s32 128, 128
          %184 = vsyncadd %s178, %s183
          %s185 = smul.addr %s19, 128
          %s186 = scalar_lea.hbm %s0, %s185
          %s188 = sshll.u32 %s181, 4
          %s189 = int_to_ptr.vmem [resolvable:$true] %s188
          %191 = dma.hbm_to_vmem [thread:$0]  %s186, 128, %s189, %s178
        $region28: #{tpu_custom_call.1} parent=23 // pred_fallthru
          _
        // Predicated region
        $region29: #{tpu_custom_call.1} parent=23 // pred_check
          %p192 = pneg %p65
        $region30: #{tpu_custom_call.1} parent=23 // pred_check_branch
          %194 = sbr.rel (%p192) target = $region32
        $region31: #{tpu_custom_call.1} parent=23 // pred_region
          %s195 = sand.u32 %s19, 1
          %s196 = scalar_lea.sflag [#allocation6], %s195
          %s197 = sand.u32 %s55, 1
          %s198 = smul.addr %s197, 8
          %s199 = scalar_lea.vmem [#allocation5], %s198
          %s201 = ssub.s32 128, 128
          %202 = vsyncadd %s196, %s201
          %s203 = smul.addr %s19, 128
          %s204 = scalar_lea.hbm %s1, %s203
          %s206 = sshll.u32 %s199, 4
          %s207 = int_to_ptr.vmem [resolvable:$true] %s206
          %209 = dma.hbm_to_vmem [thread:$0]  %s204, 128, %s207, %s196
        $region32: #{tpu_custom_call.1} parent=23 // pred_fallthru
          _
      $region24: #{tpu_custom_call.1} parent=5 // pred_fallthru
        _
      %p210 = scmp.le.s32.totalorder 1, %s19
      %p211 = scmp.lt.s32.totalorder %s19, 3
      %p212 = pnand %p210, %p211
      %p213 = pneg %p212
      // Predicated region
      $region33: #{tpu_custom_call.1} parent=5 // pred_check
        _
      $region34: #{tpu_custom_call.1} parent=5 // pred_check_branch
        %215 = sbr.rel (%p212) target = $region36
      $region35: #{tpu_custom_call.1} parent=5 // pred_region
        %s216 = ssub.s32 %s19, 1
        %s217 = sand.u32 %s32, 1
        %s218 = scalar_lea.sflag [#allocation3], %s217
        %s219 = sand.u32 %s32, 1
        %s220 = smul.addr %s219, 8
        %s221 = scalar_lea.vmem [#allocation2], %s220
        // Predicated region
        $region37: #{tpu_custom_call.1} parent=35 // pred_check
          %p222 = pneg %p45
        $region38: #{tpu_custom_call.1} parent=35 // pred_check_branch
          %224 = sbr.rel (%p222) target = $region40
        $region39: #{tpu_custom_call.1} parent=35 // pred_region
          %225 = dma.done %s218, 128
        $region40: #{tpu_custom_call.1} parent=35 // pred_fallthru
          _
        %s226 = sand.u32 %s24, 1
        %s227 = scalar_lea.sflag [#allocation6], %s226
        %s228 = sand.u32 %s58, 1
        %s229 = smul.addr %s228, 8
        %s230 = scalar_lea.vmem [#allocation5], %s229
        // Predicated region
        $region41: #{tpu_custom_call.1} parent=35 // pred_check
          %p231 = pneg %p71
        $region42: #{tpu_custom_call.1} parent=35 // pred_check_branch
          %233 = sbr.rel (%p231) target = $region44
        $region43: #{tpu_custom_call.1} parent=35 // pred_region
          %234 = dma.done %s227, 128
        $region44: #{tpu_custom_call.1} parent=35 // pred_fallthru
          _
        // Predicated region
        $region45: #{tpu_custom_call.1} parent=35 // pred_check
          %p235 = pneg %p92
        $region46: #{tpu_custom_call.1} parent=35 // pred_check_branch
          %237 = sbr.rel (%p235) target = $region48
        $region47: #{tpu_custom_call.1} parent=35 // pred_region
          %238 = dma.done [#allocation6], 512
        $region48: #{tpu_custom_call.1} parent=35 // pred_fallthru
          _
        %s239 = sand.u32 %s32, 1
        %s240 = scalar_lea.sflag [#allocation3], %s239
        %s241 = sand.u32 %s32, 1
        %s242 = smul.addr %s241, 8
        %s243 = scalar_lea.vmem [#allocation2], %s242
        %p244 = pneg %p45
        %p245 = pneg %p42
        %s246 = sand.u32 %s24, 1
        %s247 = scalar_lea.sflag [#allocation6], %s246
        %s248 = sand.u32 %s58, 1
        %s249 = smul.addr %s248, 8
        %s250 = scalar_lea.vmem [#allocation5], %s249
        %p251 = pneg %p71
        %p252 = pneg %p68
        %p253 = pneg %p92
        %p254 = pneg %p89
        %p255 = pneg %p113
        %p256 = pneg %p110
        %p257 = pneg %p139
        %p258 = pneg %p136
        %s259 = sand.u32 %s126, 1
        %s260 = scalar_lea.sflag [#allocation4], %s259
        %s261 = sand.u32 %s126, 1
        %s262 = smul.addr %s261, 8
        %s263 = scalar_lea.vmem [#allocation8], %s262
        %v264 = vld [vmem:[%s230] sm:$0xff]
        %v265 = vld [vmem:[#allocation7] sm:$0xff]
        %v266 = vld [vmem:[#allocation7 + $0x8] sm:$0xff]
        %s267 = scalar_lea.vmem [#allocation7], 16
        %v268 = vld [vmem:[%s267] sm:$0xff]
        %v269 = vld [vmem:[%s267 + $0x8] sm:$0xff]
        %v270 = vld [vmem:[%s3] sm:$0x3]
        %v271 = vlaneseq
        %v272 = vshrl.u32 %v271, 7
        %v273 = vsub.s32 0, %v272
        %v274 = vrot.slane %v270, %v273
        %vm275 = vcmask 130048
        %v277 = vsel %vm275, %v264, 0
        %279 = vmatprep.subr.mxu0 0.0
        %280 = vmatpush1.msra.mxu0 %v265
        %281 = vmatprep.subr.mxu0 0.0
        %282 = vmatpush1.msra.mxu0 %v266
        %283 = vmatprep.subr.mxu0 0.0
        %284 = vmatpush1.msra.mxu0 0.0
        %285 = vmatprep.subr.mxu0 0.0
        %286 = vmatpush1.msra.mxu0 0.0
        %287 = vmatprep.subr.mxu0 0.0
        %288 = vmatpush1.msra.mxu0 0.0
        %289 = vmatprep.subr.mxu0 0.0
        %290 = vmatpush1.msra.mxu0 0.0
        %291 = vmatprep.subr.mxu0 0.0
        %292 = vmatpush1.msra.mxu0 0.0
        %293 = vmatprep.subr.mxu0 0.0
        %294 = vmatpush1.msra.mxu0 0.0
        %295 = vmatprep.subr.mxu0 0.0
        %296 = vmatpush1.msra.mxu0 0.0
        %297 = vmatprep.subr.mxu0 0.0
        %298 = vmatpush1.msra.mxu0 0.0
        %299 = vmatprep.subr.mxu0 0.0
        %300 = vmatpush1.msra.mxu0 0.0
        %301 = vmatprep.subr.mxu0 0.0
        %302 = vmatpush1.msra.mxu0 0.0
        %303 = vmatprep.subr.mxu0 0.0
        %304 = vmatpush1.msra.mxu0 0.0
        %305 = vmatprep.subr.mxu0 0.0
        %306 = vmatpush1.msra.mxu0 0.0
        %307 = vmatprep.subr.mxu0 0.0
        %308 = vmatpush1.msra.mxu0 0.0
        %309 = vmatprep.subr.mxu0 0.0
        %310 = vmatpush1.msra.mxu0 0.0
        %311 = vmatprep.subr.mxu0 0.0
        %312 = vmatpush1.msra.mxu0 0.0
        %313 = vmatprep.subr.mxu0 0.0
        %314 = vmatpush1.msra.mxu0 0.0
        %315 = vmatprep.subr.mxu0 0.0
        %316 = vmatpush1.msra.mxu0 0.0
        %317 = vmatprep.subr.mxu0 0.0
        %318 = vmatpush1.msra.mxu0 0.0
        %319 = vmatprep.subr.mxu0 0.0
        %320 = vmatpush1.msra.mxu0 0.0
        %321 = vmatprep.subr.mxu0 0.0
        %322 = vmatpush1.msra.mxu0 0.0
        %323 = vmatprep.subr.mxu0 0.0
        %324 = vmatpush1.msra.mxu0 0.0
        %325 = vmatprep.subr.mxu0 0.0
        %326 = vmatpush1.msra.mxu0 0.0
        %327 = vmatprep.subr.mxu0 0.0
        %328 = vmatpush1.msra.mxu0 0.0
        %329 = vmatprep.subr.mxu0 0.0
        %330 = vmatpush1.msra.mxu0 0.0
        %331 = vmatprep.subr.mxu0 0.0
        %332 = vmatpush1.msra.mxu0 0.0
        %333 = vmatprep.subr.mxu0 0.0
        %334 = vmatpush1.msra.mxu0 0.0
        %335 = vmatprep.subr.mxu0 0.0
        %336 = vmatpush1.msra.mxu0 0.0
        %337 = vmatprep.subr.mxu0 0.0
        %338 = vmatpush1.msra.mxu0 0.0
        %339 = vmatprep.subr.mxu0 0.0
        %340 = vmatpush1.msra.mxu0 0.0
        %341 = vmatprep.subr.mxu0 0.0
        %342 = vmatpush1.msra.mxu0 0.0
        %343 = vmatprep.mubr.f32.mxu0 0.0
        %344 = vmatmul.mubr.f32.gmra.mrb[0].mxu0 %v277
        %v345 = vpop.f32.mrb[0].mxu0
        %v346 = vadd.f32 %v274, %v345
        %v347 = vpop.f32.mrb[0].mxu0
        %348 = vdwg.mxu0
        %v349 = vlaneseq
        %v350 = vshrl.u32 %v349, 7
        %v351 = vsub.s32 1, %v350
        %v352 = vrot.slane %v270, %v351
        %353 = vmatprep.subr.mxu0 0.0
        %354 = vmatpush1.msra.mxu0 %v268
        %355 = vmatprep.subr.mxu0 0.0
        %356 = vmatpush1.msra.mxu0 %v269
        %357 = vmatprep.subr.mxu0 0.0
        %358 = vmatpush1.msra.mxu0 0.0
        %359 = vmatprep.subr.mxu0 0.0
        %360 = vmatpush1.msra.mxu0 0.0
        %361 = vmatprep.subr.mxu0 0.0
        %362 = vmatpush1.msra.mxu0 0.0
        %363 = vmatprep.subr.mxu0 0.0
        %364 = vmatpush1.msra.mxu0 0.0
        %365 = vmatprep.subr.mxu0 0.0
        %366 = vmatpush1.msra.mxu0 0.0
        %367 = vmatprep.subr.mxu0 0.0
        %368 = vmatpush1.msra.mxu0 0.0
        %369 = vmatprep.subr.mxu0 0.0
        %370 = vmatpush1.msra.mxu0 0.0
        %371 = vmatprep.subr.mxu0 0.0
        %372 = vmatpush1.msra.mxu0 0.0
        %373 = vmatprep.subr.mxu0 0.0
        %374 = vmatpush1.msra.mxu0 0.0
        %375 = vmatprep.subr.mxu0 0.0
        %376 = vmatpush1.msra.mxu0 0.0
        %377 = vmatprep.subr.mxu0 0.0
        %378 = vmatpush1.msra.mxu0 0.0
        %379 = vmatprep.subr.mxu0 0.0
        %380 = vmatpush1.msra.mxu0 0.0
        %381 = vmatprep.subr.mxu0 0.0
        %382 = vmatpush1.msra.mxu0 0.0
        %383 = vmatprep.subr.mxu0 0.0
        %384 = vmatpush1.msra.mxu0 0.0
        %385 = vmatprep.subr.mxu0 0.0
        %386 = vmatpush1.msra.mxu0 0.0
        %387 = vmatprep.subr.mxu0 0.0
        %388 = vmatpush1.msra.mxu0 0.0
        %389 = vmatprep.subr.mxu0 0.0
        %390 = vmatpush1.msra.mxu0 0.0
        %391 = vmatprep.subr.mxu0 0.0
        %392 = vmatpush1.msra.mxu0 0.0
        %393 = vmatprep.subr.mxu0 0.0
        %394 = vmatpush1.msra.mxu0 0.0
        %395 = vmatprep.subr.mxu0 0.0
        %396 = vmatpush1.msra.mxu0 0.0
        %397 = vmatprep.subr.mxu0 0.0
        %398 = vmatpush1.msra.mxu0 0.0
        %399 = vmatprep.subr.mxu0 0.0
        %400 = vmatpush1.msra.mxu0 0.0
        %401 = vmatprep.subr.mxu0 0.0
        %402 = vmatpush1.msra.mxu0 0.0
        %403 = vmatprep.subr.mxu0 0.0
        %404 = vmatpush1.msra.mxu0 0.0
        %405 = vmatprep.subr.mxu0 0.0
        %406 = vmatpush1.msra.mxu0 0.0
        %407 = vmatprep.subr.mxu0 0.0
        %408 = vmatpush1.msra.mxu0 0.0
        %409 = vmatprep.subr.mxu0 0.0
        %410 = vmatpush1.msra.mxu0 0.0
        %411 = vmatprep.subr.mxu0 0.0
        %412 = vmatpush1.msra.mxu0 0.0
        %413 = vmatprep.subr.mxu0 0.0
        %414 = vmatpush1.msra.mxu0 0.0
        %415 = vmatprep.subr.mxu0 0.0
        %416 = vmatpush1.msra.mxu0 0.0
        %417 = vmatprep.mubr.f32.mxu0 0.0
        %418 = vmatmul.mubr.f32.gmra.mrb[0].mxu0 %v277
        %v419 = vpop.f32.mrb[0].mxu0
        %v420 = vadd.f32 %v352, %v419
        %v421 = vpop.f32.mrb[0].mxu0
        %422 = vdwg.mxu0
        %v423 = vld [vmem:[%s221] sm:$0xff]
        %vm424 = vcmask 261120
        %v425 = vsel %vm424, %v423, 0.0
        %426 = vadd.xlane.f32.xlu0 %v425
        %v427 = vpop.xlane.xlu0 %426
        %v428 = vmul.f32 %v427, 0.03125
        %v429 = vsub.f32 %v423, %v428
        %v430 = vmul.f32 %v429, %v429
        %v431 = vsel %vm424, %v430, 0.0
        %432 = vadd.xlane.f32.xlu0 %v431
        %v433 = vpop.xlane.xlu0 %432
        %v434 = vmul.f32 %v433, 0.03125
        %v435 = vadd.f32 %v434, 1e-12
        %v436 = vrsqrt.pop %v435
        %v437 = vmul.f32 %v429, %v436
        %v438 = vmul.f32 %v437, %v346
        %v439 = vadd.f32 %v438, %v420
        %440 = vst.msk [vmem:[%s263] sm:$0xff] %vm424, %v439
        %s441 = sand.u32 %s126, 1
        %s442 = scalar_lea.sflag [#allocation4], %s441
        %s443 = sand.u32 %s126, 1
        %s444 = smul.addr %s443, 8
        %s445 = scalar_lea.vmem [#allocation8], %s444
        // Predicated region
        $region49: #{tpu_custom_call.1} parent=35 // pred_check
          %p446 = pneg %p136
        $region50: #{tpu_custom_call.1} parent=35 // pred_check_branch
          %448 = sbr.rel (%p446) target = $region52
        $region51: #{tpu_custom_call.1} parent=35 // pred_region
          %s450 = ssub.s32 128, 128
          %451 = vsyncadd %s442, %s450
          %s452 = smul.addr %s24, 128
          %s453 = scalar_lea.hbm %s4, %s452
          %s455 = sshll.u32 %s445, 4
          %s456 = int_to_ptr.vmem [resolvable:$true] %s455
          %458 = dma.vmem_to_hbm [thread:$0]  %s456, 128, %s453, %s442
        $region52: #{tpu_custom_call.1} parent=35 // pred_fallthru
          _
      $region36: #{tpu_custom_call.1} parent=5 // pred_fallthru
        _
      %p459 = scmp.le.s32.totalorder 2, %s19
      // Predicated region
      $region53: #{tpu_custom_call.1} parent=5 // pred_check
        %p460 = pneg %p459
      $region54: #{tpu_custom_call.1} parent=5 // pred_check_branch
        %462 = sbr.rel (%p460) target = $region56
      $region55: #{tpu_custom_call.1} parent=5 // pred_region
        %s463 = ssub.s32 %s19, 2
        // Predicated region
        $region57: #{tpu_custom_call.1} parent=55 // pred_check
          %p464 = pneg %p142
        $region58: #{tpu_custom_call.1} parent=55 // pred_check_branch
          %466 = sbr.rel (%p464) target = $region60
        $region59: #{tpu_custom_call.1} parent=55 // pred_region
          %s467 = sand.u32 %s127, 1
          %s468 = scalar_lea.sflag [#allocation4], %s467
          %s469 = sand.u32 %s127, 1
          %s470 = smul.addr %s469, 8
          %s471 = scalar_lea.vmem [#allocation8], %s470
          %472 = dma.done %s468, 128
        $region60: #{tpu_custom_call.1} parent=55 // pred_fallthru
          _
      $region56: #{tpu_custom_call.1} parent=5 // pred_fallthru
        _
    $region6: #{tpu_custom_call.1} parent=1 // loop_footer
      %s23 = sadd.s32 1, %s19
    $region7: #{tpu_custom_call.1} parent=1 // loop_footer_branch
      %18 = sbr.rel target = $region3
    $region8: #{tpu_custom_call.1} parent=1 // loop_exit
      _
    %473 = vsyncpa [#allocation3], 1
    %s474 = scalar_lea.sflag [#allocation3], 1
    %475 = vsyncpa %s474, 1
    %476 = vsyncpa [#allocation6], 1
    %s477 = scalar_lea.sflag [#allocation6], 1
    %478 = vsyncpa %s477, 1
    %479 = vsyncpa [#allocation4], 1
    %s480 = scalar_lea.sflag [#allocation4], 1
    %481 = vsyncpa %s480, 1

</llo_original>
